<compile_context>
chip_gen: v5e
topology: v5e:2x2
jax: 0.10.0
libtpu: 0.0.40
codegen_flags: <defaults>
</compile_context>

<pallas_src>
import functools

import jax
import jax.numpy as jnp
from jax.experimental import pallas as pl
from jax.experimental.pallas import tpu as pltpu


OUT_PAD = 128  # lane-dense output width


def _round_up(n, m):
    return -(-n // m) * m


def critic_kernel(x_ref, a_ref, w1_ref, b1_ref, w2x_ref, w2a_ref, b2_ref,
                  w3_ref, b3_ref, out_ref, *, action_dim):
    # fc1: cast x to bf16 in-kernel, MXU matmul, f32 accumulate; bias+ReLU in f32.
    xb = x_ref[...].astype(w1_ref.dtype)
    h1 = jnp.dot(xb, w1_ref[...], preferred_element_type=jnp.float32)
    h1 = jnp.maximum(h1 + b1_ref[...], 0.0)

    # fc2 on cat([h1, a]) == h1 @ W2x + a @ W2a.
    h1b = h1.astype(w2x_ref.dtype)
    h2 = jnp.dot(h1b, w2x_ref[...], preferred_element_type=jnp.float32)

    # a @ W2a done on the VPU as `action_dim` broadcast-FMAs in f32 (K is tiny,
    # a padded MXU matmul would waste full-depth tile passes for ~2% of FLOPs).
    a = a_ref[...]            # (tm, action_dim) f32
    w2a = w2a_ref[...]        # (action_dim, h2) f32
    for k in range(action_dim):
        h2 = h2 + a[:, k:k + 1] * w2a[k:k + 1, :]

    h2 = jnp.maximum(h2 + b2_ref[...], 0.0)

    # fc3 (no activation) into a lane-dense [TM, 128] slab.
    h2b = h2.astype(w3_ref.dtype)
    o = jnp.dot(h2b, w3_ref[...], preferred_element_type=jnp.float32) + b3_ref[...]
    out_ref[...] = o.astype(out_ref.dtype)


def init_params(key, input_dim, output_dim, action_dim,
                hidden1_dim=256, hidden2_dim=512):
    """PyTorch-style uniform(-1/sqrt(fan_in), 1/sqrt(fan_in)) init.

    Weights are stored as [in, out] (transposed vs. nn.Linear); fc2's weight is
    pre-split into the block acting on h1 and the block acting on a.
    """
    ks = jax.random.split(key, 6)

    def lin(kw, kb, fan_in, fan_out):
        bound = 1.0 / jnp.sqrt(jnp.float32(fan_in))
        w = jax.random.uniform(kw, (fan_in, fan_out), jnp.float32, -bound, bound)
        b = jax.random.uniform(kb, (1, fan_out), jnp.float32, -bound, bound)
        return w, b

    w1, b1 = lin(ks[0], ks[1], input_dim, hidden1_dim)
    w2, b2 = lin(ks[2], ks[3], hidden1_dim + action_dim, hidden2_dim)
    w3, b3 = lin(ks[4], ks[5], hidden2_dim, output_dim)
    w2x, w2a = w2[:hidden1_dim], w2[hidden1_dim:]
    return (w1, b1, w2x, w2a, b2, w3, b3)


def prepare_params(params, out_pad=OUT_PAD, dot_dtype=jnp.bfloat16):
    """One-time device-side prep.

    MXU weights (W1, W2x, W3) -> bf16; W2a stays f32 (used on the VPU); biases
    stay f32; fc3 weight/bias zero-padded to `out_pad` lanes. Returns
    (array_tuple, out_dim) where out_dim is a *Python int* kept OUT of the
    traced arguments so the wrapper's output slice stays static.
    """
    w1, b1, w2x, w2a, b2, w3, b3 = params
    out_dim = int(w3.shape[1])
    pad = out_pad - out_dim
    w3p = jnp.pad(w3, ((0, 0), (0, pad)))
    b3p = jnp.pad(b3, ((0, 0), (0, pad)))
    arrays = (w1.astype(dot_dtype), b1.astype(jnp.float32),
              w2x.astype(dot_dtype), w2a.astype(jnp.float32),
              b2.astype(jnp.float32),
              w3p.astype(dot_dtype), b3p.astype(jnp.float32))
    return arrays, out_dim


@functools.partial(jax.jit, static_argnames=("out_dim", "tile_m"))
def critic_forward(x, a, prepared_arrays, *, out_dim, tile_m=1024):
    """x: [B, input_dim] f32, a: [B, action_dim] f32 -> [B, out_dim] f32."""
    w1, b1, w2x, w2a, b2, w3p, b3p = prepared_arrays
    B, in_dim = x.shape
    act_dim = a.shape[1]
    h1_dim = w1.shape[1]
    h2_dim = w2x.shape[1]
    out_pad = w3p.shape[1]

    # Batch tile: multiple of 16 (bf16 sublane pack), capped at tile_m.
    tm = min(_round_up(tile_m, 16), _round_up(B, 16))
    b_pad = _round_up(B, tm)
    if b_pad != B:
        x = jnp.pad(x, ((0, b_pad - B), (0, 0)))
        a = jnp.pad(a, ((0, b_pad - B), (0, 0)))

    grid = (b_pad // tm,)

    def act_spec(d):
        return pl.BlockSpec((tm, d), lambda i: (i, 0))

    def const_spec(arr):
        return pl.BlockSpec(arr.shape, lambda i: (0, 0))

    flops = 2 * b_pad * (in_dim * h1_dim + (h1_dim + act_dim) * h2_dim
                         + h2_dim * out_pad)
    weight_bytes = sum(int(w.size) * w.dtype.itemsize
                       for w in (w1, b1, w2x, w2a, b2, w3p, b3p))
    bytes_accessed = (int(x.size) * x.dtype.itemsize
                      + int(a.size) * a.dtype.itemsize
                      + weight_bytes
                      + b_pad * out_pad * 4)

    compiler_kwargs = dict(dimension_semantics=("parallel",))
    if tm >= 1024:
        # Large batch tiles (f32 in/out + h1/h2 intermediates, double-buffered)
        # can brush the default scoped-VMEM limit (16 MiB on v5e).
        compiler_kwargs["vmem_limit_bytes"] = 64 * 1024 * 1024

    kernel = functools.partial(critic_kernel, action_dim=act_dim)

    out = pl.pallas_call(
        kernel,
        out_shape=jax.ShapeDtypeStruct((b_pad, out_pad), jnp.float32),
        grid=grid,
        in_specs=[
            act_spec(in_dim),          # x tile (f32, cast in kernel)
            act_spec(act_dim),         # a tile (f32, used on VPU)
            const_spec(w1), const_spec(b1),
            const_spec(w2x), const_spec(w2a), const_spec(b2),
            const_spec(w3p), const_spec(b3p),
        ],
        out_specs=pl.BlockSpec((tm, out_pad), lambda i: (i, 0)),
        compiler_params=pltpu.CompilerParams(**compiler_kwargs),
        cost_estimate=pl.CostEstimate(
            flops=flops, transcendentals=0, bytes_accessed=bytes_accessed),
    )(x, a, w1, b1, w2x, w2a, b2, w3p, b3p)

    return out[:B, :out_dim]


def critic_reference(x, a, params):
    """Plain-JAX f32 reference matching the PyTorch forward."""
    w1, b1, w2x, w2a, b2, w3, b3 = params
    h1 = jnp.maximum(x @ w1 + b1, 0.0)
    w2 = jnp.concatenate([w2x, w2a], axis=0)
    h2 = jnp.maximum(jnp.concatenate([h1, a], axis=-1) @ w2 + b2, 0.0)
    return h2 @ w3 + b3


if __name__ == "__main__":
    B = 8
    input_dim = 32
    action_dim = 8
    output_dim = 4
    hidden1_dim = 256
    hidden2_dim = 512

    key = jax.random.PRNGKey(0)
    k_x, k_a, k_p = jax.random.split(key, 3)

    x = jax.random.normal(k_x, (B, input_dim), jnp.float32)
    a = jax.random.normal(k_a, (B, action_dim), jnp.float32)
    params = init_params(k_p, input_dim, output_dim, action_dim,
                         hidden1_dim, hidden2_dim)
    prepared_arrays, out_dim = prepare_params(params)

    out = critic_forward(x, a, prepared_arrays, out_dim=out_dim)
    out = jax.block_until_ready(out)

    ref = critic_reference(x, a, params)
    assert out.shape == (B, output_dim), out.shape
    # bf16 matmul inputs w/ f32 accumulation -> loosened tolerance vs f32 ref.
    assert jnp.allclose(out, ref, atol=5e-2, rtol=5e-2), (
        f"max abs err {float(jnp.max(jnp.abs(out - ref)))}")

    print("KERNEL_OK")
</pallas_src>

<mosaic_0001>
module attributes {stable_mosaic.version = 11 : i64} {
  func.func @critic_kernel(%arg0: i32, %arg1: memref<16x32xf32, #tpu.memory_space<vmem>>, %arg2: memref<16x8xf32, #tpu.memory_space<vmem>>, %arg3: memref<32x256xbf16, #tpu.memory_space<vmem>>, %arg4: memref<1x256xf32, #tpu.memory_space<vmem>>, %arg5: memref<256x512xbf16, #tpu.memory_space<vmem>>, %arg6: memref<8x512xf32, #tpu.memory_space<vmem>>, %arg7: memref<1x512xf32, #tpu.memory_space<vmem>>, %arg8: memref<512x128xbf16, #tpu.memory_space<vmem>>, %arg9: memref<1x128xf32, #tpu.memory_space<vmem>>, %arg10: memref<16x128xf32, #tpu.memory_space<vmem>>) attributes {dimension_semantics = [#tpu.dimension_semantics<parallel>], iteration_bounds = array<i64: 1>, scalar_prefetch = 0 : i64, scratch_operands = 0 : i64, tpu.core_type = #tpu.core_type<tc>, window_params = [{transform_indices = @transform_0, window_bounds = array<i64: 16, 32>}, {transform_indices = @transform_1, window_bounds = array<i64: 16, 8>}, {pipeline_mode = #tpu.pipeline_mode<synchronous>, transform_indices = @transform_2, window_bounds = array<i64: 32, 256>}, {pipeline_mode = #tpu.pipeline_mode<synchronous>, transform_indices = @transform_3, window_bounds = array<i64: 1, 256>}, {pipeline_mode = #tpu.pipeline_mode<synchronous>, transform_indices = @transform_4, window_bounds = array<i64: 256, 512>}, {pipeline_mode = #tpu.pipeline_mode<synchronous>, transform_indices = @transform_5, window_bounds = array<i64: 8, 512>}, {pipeline_mode = #tpu.pipeline_mode<synchronous>, transform_indices = @transform_6, window_bounds = array<i64: 1, 512>}, {pipeline_mode = #tpu.pipeline_mode<synchronous>, transform_indices = @transform_7, window_bounds = array<i64: 512, 128>}, {pipeline_mode = #tpu.pipeline_mode<synchronous>, transform_indices = @transform_8, window_bounds = array<i64: 1, 128>}, {transform_indices = @transform_9, window_bounds = array<i64: 16, 128>}]} {
    %c0 = arith.constant 0 : index
    %c0_0 = arith.constant 0 : index
    %0 = vector.load %arg1[%c0, %c0_0] : memref<16x32xf32, #tpu.memory_space<vmem>>, vector<16x32xf32>
    %1 = arith.truncf %0 : vector<16x32xf32> to vector<16x32xbf16>
    %c0_1 = arith.constant 0 : index
    %c0_2 = arith.constant 0 : index
    %2 = vector.load %arg3[%c0_1, %c0_2] : memref<32x256xbf16, #tpu.memory_space<vmem>>, vector<32x256xbf16>
    %cst = arith.constant dense<0.000000e+00> : vector<16x256xf32>
    %3 = tpu.matmul %1, %2, %cst {dimension_numbers = #tpu.dot_dimension_numbers<[1], [0], [0], [1], [0, 0, 1, 1], [], []>} : vector<16x32xbf16>, vector<32x256xbf16>, vector<16x256xf32> -> vector<16x256xf32>
    %c0_3 = arith.constant 0 : index
    %c0_4 = arith.constant 0 : index
    %4 = vector.load %arg4[%c0_3, %c0_4] : memref<1x256xf32, #tpu.memory_space<vmem>>, vector<1x256xf32>
    %5 = vector.broadcast %4 : vector<1x256xf32> to vector<16x256xf32>
    %6 = arith.addf %3, %5 : vector<16x256xf32>
    %cst_5 = arith.constant 0.000000e+00 : f32
    %7 = vector.broadcast %cst_5 : f32 to vector<16x256xf32>
    %8 = arith.maximumf %6, %7 : vector<16x256xf32>
    %9 = arith.truncf %8 : vector<16x256xf32> to vector<16x256xbf16>
    %c0_6 = arith.constant 0 : index
    %c0_7 = arith.constant 0 : index
    %10 = vector.load %arg5[%c0_6, %c0_7] : memref<256x512xbf16, #tpu.memory_space<vmem>>, vector<256x512xbf16>
    %cst_8 = arith.constant dense<0.000000e+00> : vector<16x512xf32>
    %11 = tpu.matmul %9, %10, %cst_8 {dimension_numbers = #tpu.dot_dimension_numbers<[1], [0], [0], [1], [0, 0, 1, 1], [], []>} : vector<16x256xbf16>, vector<256x512xbf16>, vector<16x512xf32> -> vector<16x512xf32>
    %c0_9 = arith.constant 0 : index
    %c0_10 = arith.constant 0 : index
    %12 = vector.load %arg2[%c0_9, %c0_10] : memref<16x8xf32, #tpu.memory_space<vmem>>, vector<16x8xf32>
    %c0_11 = arith.constant 0 : index
    %c0_12 = arith.constant 0 : index
    %13 = vector.load %arg6[%c0_11, %c0_12] : memref<8x512xf32, #tpu.memory_space<vmem>>, vector<8x512xf32>
    %14 = vector.extract_strided_slice %12 {offsets = [0, 0], sizes = [16, 1], strides = [1, 1]} : vector<16x8xf32> to vector<16x1xf32>
    %15 = vector.extract_strided_slice %13 {offsets = [0, 0], sizes = [1, 512], strides = [1, 1]} : vector<8x512xf32> to vector<1x512xf32>
    %16 = vector.broadcast %14 : vector<16x1xf32> to vector<16x512xf32>
    %17 = vector.broadcast %15 : vector<1x512xf32> to vector<16x512xf32>
    %18 = arith.mulf %16, %17 : vector<16x512xf32>
    %19 = arith.addf %11, %18 : vector<16x512xf32>
    %20 = vector.extract_strided_slice %12 {offsets = [0, 1], sizes = [16, 1], strides = [1, 1]} : vector<16x8xf32> to vector<16x1xf32>
    %21 = vector.extract_strided_slice %13 {offsets = [1, 0], sizes = [1, 512], strides = [1, 1]} : vector<8x512xf32> to vector<1x512xf32>
    %22 = vector.broadcast %20 : vector<16x1xf32> to vector<16x512xf32>
    %23 = vector.broadcast %21 : vector<1x512xf32> to vector<16x512xf32>
    %24 = arith.mulf %22, %23 : vector<16x512xf32>
    %25 = arith.addf %19, %24 : vector<16x512xf32>
    %26 = vector.extract_strided_slice %12 {offsets = [0, 2], sizes = [16, 1], strides = [1, 1]} : vector<16x8xf32> to vector<16x1xf32>
    %27 = vector.extract_strided_slice %13 {offsets = [2, 0], sizes = [1, 512], strides = [1, 1]} : vector<8x512xf32> to vector<1x512xf32>
    %28 = vector.broadcast %26 : vector<16x1xf32> to vector<16x512xf32>
    %29 = vector.broadcast %27 : vector<1x512xf32> to vector<16x512xf32>
    %30 = arith.mulf %28, %29 : vector<16x512xf32>
    %31 = arith.addf %25, %30 : vector<16x512xf32>
    %32 = vector.extract_strided_slice %12 {offsets = [0, 3], sizes = [16, 1], strides = [1, 1]} : vector<16x8xf32> to vector<16x1xf32>
    %33 = vector.extract_strided_slice %13 {offsets = [3, 0], sizes = [1, 512], strides = [1, 1]} : vector<8x512xf32> to vector<1x512xf32>
    %34 = vector.broadcast %32 : vector<16x1xf32> to vector<16x512xf32>
    %35 = vector.broadcast %33 : vector<1x512xf32> to vector<16x512xf32>
    %36 = arith.mulf %34, %35 : vector<16x512xf32>
    %37 = arith.addf %31, %36 : vector<16x512xf32>
    %38 = vector.extract_strided_slice %12 {offsets = [0, 4], sizes = [16, 1], strides = [1, 1]} : vector<16x8xf32> to vector<16x1xf32>
    %39 = vector.extract_strided_slice %13 {offsets = [4, 0], sizes = [1, 512], strides = [1, 1]} : vector<8x512xf32> to vector<1x512xf32>
    %40 = vector.broadcast %38 : vector<16x1xf32> to vector<16x512xf32>
    %41 = vector.broadcast %39 : vector<1x512xf32> to vector<16x512xf32>
    %42 = arith.mulf %40, %41 : vector<16x512xf32>
    %43 = arith.addf %37, %42 : vector<16x512xf32>
    %44 = vector.extract_strided_slice %12 {offsets = [0, 5], sizes = [16, 1], strides = [1, 1]} : vector<16x8xf32> to vector<16x1xf32>
    %45 = vector.extract_strided_slice %13 {offsets = [5, 0], sizes = [1, 512], strides = [1, 1]} : vector<8x512xf32> to vector<1x512xf32>
    %46 = vector.broadcast %44 : vector<16x1xf32> to vector<16x512xf32>
    %47 = vector.broadcast %45 : vector<1x512xf32> to vector<16x512xf32>
    %48 = arith.mulf %46, %47 : vector<16x512xf32>
    %49 = arith.addf %43, %48 : vector<16x512xf32>
    %50 = vector.extract_strided_slice %12 {offsets = [0, 6], sizes = [16, 1], strides = [1, 1]} : vector<16x8xf32> to vector<16x1xf32>
    %51 = vector.extract_strided_slice %13 {offsets = [6, 0], sizes = [1, 512], strides = [1, 1]} : vector<8x512xf32> to vector<1x512xf32>
    %52 = vector.broadcast %50 : vector<16x1xf32> to vector<16x512xf32>
    %53 = vector.broadcast %51 : vector<1x512xf32> to vector<16x512xf32>
    %54 = arith.mulf %52, %53 : vector<16x512xf32>
    %55 = arith.addf %49, %54 : vector<16x512xf32>
    %56 = vector.extract_strided_slice %12 {offsets = [0, 7], sizes = [16, 1], strides = [1, 1]} : vector<16x8xf32> to vector<16x1xf32>
    %57 = vector.extract_strided_slice %13 {offsets = [7, 0], sizes = [1, 512], strides = [1, 1]} : vector<8x512xf32> to vector<1x512xf32>
    %58 = vector.broadcast %56 : vector<16x1xf32> to vector<16x512xf32>
    %59 = vector.broadcast %57 : vector<1x512xf32> to vector<16x512xf32>
    %60 = arith.mulf %58, %59 : vector<16x512xf32>
    %61 = arith.addf %55, %60 : vector<16x512xf32>
    %c0_13 = arith.constant 0 : index
    %c0_14 = arith.constant 0 : index
    %62 = vector.load %arg7[%c0_13, %c0_14] : memref<1x512xf32, #tpu.memory_space<vmem>>, vector<1x512xf32>
    %63 = vector.broadcast %62 : vector<1x512xf32> to vector<16x512xf32>
    %64 = arith.addf %61, %63 : vector<16x512xf32>
    %cst_15 = arith.constant 0.000000e+00 : f32
    %65 = vector.broadcast %cst_15 : f32 to vector<16x512xf32>
    %66 = arith.maximumf %64, %65 : vector<16x512xf32>
    %67 = arith.truncf %66 : vector<16x512xf32> to vector<16x512xbf16>
    %c0_16 = arith.constant 0 : index
    %c0_17 = arith.constant 0 : index
    %68 = vector.load %arg8[%c0_16, %c0_17] : memref<512x128xbf16, #tpu.memory_space<vmem>>, vector<512x128xbf16>
    %cst_18 = arith.constant dense<0.000000e+00> : vector<16x128xf32>
    %69 = tpu.matmul %67, %68, %cst_18 {dimension_numbers = #tpu.dot_dimension_numbers<[1], [0], [0], [1], [0, 0, 1, 1], [], []>} : vector<16x512xbf16>, vector<512x128xbf16>, vector<16x128xf32> -> vector<16x128xf32>
    %c0_19 = arith.constant 0 : index
    %c0_20 = arith.constant 0 : index
    %70 = vector.load %arg9[%c0_19, %c0_20] : memref<1x128xf32, #tpu.memory_space<vmem>>, vector<1x128xf32>
    %71 = vector.broadcast %70 : vector<1x128xf32> to vector<16x128xf32>
    %72 = arith.addf %69, %71 : vector<16x128xf32>
    %c0_21 = arith.constant 0 : index
    %c0_22 = arith.constant 0 : index
    %73 = vector.load %arg10[%c0_21, %c0_22] : memref<16x128xf32, #tpu.memory_space<vmem>>, vector<16x128xf32>
    tpu.vector_store %arg10[%c0_21, %c0_22], %72 {strides = array<i32>} : memref<16x128xf32, #tpu.memory_space<vmem>>, vector<16x128xf32>,
    return
  }
  func.func @transform_0(%arg0: i32) -> (i32, i32) {
    %c0_i32 = arith.constant 0 : i32
    %c0_i32_0 = arith.constant 0 : i32
    return %arg0, %c0_i32 : i32, i32
  }
  func.func @transform_1(%arg0: i32) -> (i32, i32) {
    %c0_i32 = arith.constant 0 : i32
    %c0_i32_0 = arith.constant 0 : i32
    return %arg0, %c0_i32 : i32, i32
  }
  func.func @transform_2(%arg0: i32) -> (i32, i32) {
    %c0_i32 = arith.constant 0 : i32
    %c0_i32_0 = arith.constant 0 : i32
    %c0_i32_1 = arith.constant 0 : i32
    return %c0_i32, %c0_i32_0 : i32, i32
  }
  func.func @transform_3(%arg0: i32) -> (i32, i32) {
    %c0_i32 = arith.constant 0 : i32
    %c0_i32_0 = arith.constant 0 : i32
    %c0_i32_1 = arith.constant 0 : i32
    return %c0_i32, %c0_i32_0 : i32, i32
  }
  func.func @transform_4(%arg0: i32) -> (i32, i32) {
    %c0_i32 = arith.constant 0 : i32
    %c0_i32_0 = arith.constant 0 : i32
    %c0_i32_1 = arith.constant 0 : i32
    return %c0_i32, %c0_i32_0 : i32, i32
  }
  func.func @transform_5(%arg0: i32) -> (i32, i32) {
    %c0_i32 = arith.constant 0 : i32
    %c0_i32_0 = arith.constant 0 : i32
    %c0_i32_1 = arith.constant 0 : i32
    return %c0_i32, %c0_i32_0 : i32, i32
  }
  func.func @transform_6(%arg0: i32) -> (i32, i32) {
    %c0_i32 = arith.constant 0 : i32
    %c0_i32_0 = arith.constant 0 : i32
    %c0_i32_1 = arith.constant 0 : i32
    return %c0_i32, %c0_i32_0 : i32, i32
  }
  func.func @transform_7(%arg0: i32) -> (i32, i32) {
    %c0_i32 = arith.constant 0 : i32
    %c0_i32_0 = arith.constant 0 : i32
    %c0_i32_1 = arith.constant 0 : i32
    return %c0_i32, %c0_i32_0 : i32, i32
  }
  func.func @transform_8(%arg0: i32) -> (i32, i32) {
    %c0_i32 = arith.constant 0 : i32
    %c0_i32_0 = arith.constant 0 : i32
    %c0_i32_1 = arith.constant 0 : i32
    return %c0_i32, %c0_i32_0 : i32, i32
  }
  func.func @transform_9(%arg0: i32) -> (i32, i32) {
    %c0_i32 = arith.constant 0 : i32
    %c0_i32_0 = arith.constant 0 : i32
    return %arg0, %c0_i32 : i32, i32
  }
}

</mosaic_0001>

<llo_original>
// kernel: critic_forward.1
$region0: #{critic_forward.1}
  #allocation0 [shape = 'u32[]', space=smem, size = 0x4, offset = 0x4, fixed_abs, tag = 'smem constant byte address 0x4 - core index']
  #allocation1 [shape = 'u32[72,128]{1,0:T(1,128)}', space=vmem, size = 0x9000, scoped, tag = 'internal scratch']
  %s0 = inlined_call_operand.vmem [shape: f32[16,32], index: 0, kind: input, shape index: {}]
  %s1 = inlined_call_operand.vmem [shape: f32[16,8], index: 1, kind: input, shape index: {}]
  %s2 = inlined_call_operand.vmem [shape: bf16[32,256], index: 2, kind: input, shape index: {}]
  %s3 = inlined_call_operand.vmem [shape: f32[1,256], index: 3, kind: input, shape index: {}]
  %s4 = inlined_call_operand.hbm [shape: bf16[256,512], index: 4, kind: input, shape index: {}]
  %s5 = inlined_call_operand.hbm [shape: f32[8,512], index: 5, kind: input, shape index: {}]
  %s6 = inlined_call_operand.vmem [shape: f32[1,512], index: 6, kind: input, shape index: {}]
  %s7 = inlined_call_operand.hbm [shape: bf16[512,128], index: 7, kind: input, shape index: {}]
  %s8 = inlined_call_operand.vmem [shape: f32[1,128], index: 8, kind: input, shape index: {}]
  %s9 = inlined_call_operand.vmem [shape: f32[16,128], index: 9, kind: output, shape index: {}]
  %s10 = sld [smem:[#allocation0]]
  $region58: #{critic_forward.1} parent=0
    _
  %s12 = ssub.s32 1, %s10
  %s13 = scalar_select 0, %s12, %s10
  $region1: #{critic_forward.1} parent=0
    #allocation2 [shape = 'u8[262144]{0}', space=vmem, size = 0x40000, scoped, tag = 'input window, operand 4, single buffered']
    #allocation3 [shape = 's32[1]{0}', space=sflag, size = 0x4, scoped, tag = 'scoped memory for critic_forward.1']
    #allocation4 [shape = 'u8[16384]{0}', space=vmem, size = 0x4000, scoped, tag = 'input window, operand 5, single buffered']
    #allocation5 [shape = 's32[1]{0}', space=sflag, size = 0x4, scoped, tag = 'scoped memory for critic_forward.1']
    #allocation6 [shape = 'u8[131072]{0}', space=vmem, size = 0x20000, scoped, tag = 'input window, operand 7, single buffered']
    %14 = vsyncpa [#allocation3], 0
    %15 = vsyncpa [#allocation5], 0
    // Predicated region
    $region2: #{critic_forward.1} parent=1 // pred_check
      _
    $region3: #{critic_forward.1} parent=1 // pred_check_branch
      %17 = sbr.rel (0) target = $region5
    $region4: #{critic_forward.1} parent=1 // pred_region
      _
    $region5: #{critic_forward.1} parent=1 // pred_fallthru
      _
    // Predicated region
    $region6: #{critic_forward.1} parent=1 // pred_check
      _
    $region7: #{critic_forward.1} parent=1 // pred_check_branch
      %19 = sbr.rel (0) target = $region9
    $region8: #{critic_forward.1} parent=1 // pred_region
      _
    $region9: #{critic_forward.1} parent=1 // pred_fallthru
      _
    // Predicated region
    $region10: #{critic_forward.1} parent=1 // pred_check
      _
    $region11: #{critic_forward.1} parent=1 // pred_check_branch
      %21 = sbr.rel (0) target = $region13
    $region12: #{critic_forward.1} parent=1 // pred_region
      _
    $region13: #{critic_forward.1} parent=1 // pred_fallthru
      _
    // Predicated region
    $region14: #{critic_forward.1} parent=1 // pred_check
      _
    $region15: #{critic_forward.1} parent=1 // pred_check_branch
      %23 = sbr.rel (0) target = $region17
    $region16: #{critic_forward.1} parent=1 // pred_region
      _
    $region17: #{critic_forward.1} parent=1 // pred_fallthru
      _
    // Predicated region
    $region18: #{critic_forward.1} parent=1 // pred_check
      _
    $region19: #{critic_forward.1} parent=1 // pred_check_branch
      %25 = sbr.rel (0) target = $region21
    $region20: #{critic_forward.1} parent=1 // pred_region
      %27 = vsyncadd [#allocation3], 0
      %s28 = sshll.u32 %s4, 4
      %s29 = int_to_ptr.hbm [resolvable:$true] %s28
      %s30 = sshll.u32 [#allocation2], 4
      %s31 = int_to_ptr.vmem [resolvable:$true] %s30
      %36 = dma.hbm_to_vmem [thread:$0]  %s29, 8192, %s31, [#allocation3], 256, 256, 16
    $region21: #{critic_forward.1} parent=1 // pred_fallthru
      _
    // Predicated region
    $region22: #{critic_forward.1} parent=1 // pred_check
      _
    $region23: #{critic_forward.1} parent=1 // pred_check_branch
      %38 = sbr.rel (0) target = $region25
    $region24: #{critic_forward.1} parent=1 // pred_region
      %40 = vsyncadd [#allocation5], 0
      %s42 = sshll.u32 %s5, 4
      %s43 = int_to_ptr.hbm [resolvable:$true] %s42
      %s44 = sshll.u32 [#allocation4], 4
      %s45 = int_to_ptr.vmem [resolvable:$true] %s44
      %47 = dma.hbm_to_vmem [thread:$0]  %s43, 512, %s45, [#allocation5]
    $region25: #{critic_forward.1} parent=1 // pred_fallthru
      _
    // Predicated region
    $region26: #{critic_forward.1} parent=1 // pred_check
      _
    $region27: #{critic_forward.1} parent=1 // pred_check_branch
      %49 = sbr.rel (0) target = $region29
    $region28: #{critic_forward.1} parent=1 // pred_region
      _
    $region29: #{critic_forward.1} parent=1 // pred_fallthru
      _
    // Predicated region
    $region30: #{critic_forward.1} parent=1 // pred_check
      _
    $region31: #{critic_forward.1} parent=1 // pred_check_branch
      %51 = sbr.rel (0) target = $region33
    $region32: #{critic_forward.1} parent=1 // pred_region
      %53 = vsyncadd [#allocation5], 0
      %s54 = sshll.u32 %s7, 4
      %s55 = int_to_ptr.hbm [resolvable:$true] %s54
      %s56 = sshll.u32 [#allocation6], 4
      %s57 = int_to_ptr.vmem [resolvable:$true] %s56
      %62 = dma.hbm_to_vmem [thread:$0]  %s55, 4096, %s57, [#allocation5], 64, 64, 4
    $region33: #{critic_forward.1} parent=1 // pred_fallthru
      _
    // Predicated region
    $region34: #{critic_forward.1} parent=1 // pred_check
      _
    $region35: #{critic_forward.1} parent=1 // pred_check_branch
      %64 = sbr.rel (0) target = $region37
    $region36: #{critic_forward.1} parent=1 // pred_region
      _
    $region37: #{critic_forward.1} parent=1 // pred_fallthru
      _
    // Predicated region
    $region38: #{critic_forward.1} parent=1 // pred_check
      _
    $region39: #{critic_forward.1} parent=1 // pred_check_branch
      %66 = sbr.rel (0) target = $region41
    $region40: #{critic_forward.1} parent=1 // pred_region
      %68 = dma.done [#allocation3], 8192
    $region41: #{critic_forward.1} parent=1 // pred_fallthru
      _
    // Predicated region
    $region42: #{critic_forward.1} parent=1 // pred_check
      _
    $region43: #{critic_forward.1} parent=1 // pred_check_branch
      %70 = sbr.rel (0) target = $region45
    $region44: #{critic_forward.1} parent=1 // pred_region
      %72 = dma.done [#allocation5], 512
    $region45: #{critic_forward.1} parent=1 // pred_fallthru
      _
    // Predicated region
    $region46: #{critic_forward.1} parent=1 // pred_check
      _
    $region47: #{critic_forward.1} parent=1 // pred_check_branch
      %74 = sbr.rel (0) target = $region49
    $region48: #{critic_forward.1} parent=1 // pred_region
      %76 = dma.done [#allocation5], 4096
    $region49: #{critic_forward.1} parent=1 // pred_fallthru
      _
    %v78 = vld [vmem:[%s0] sm:$0xff]
    %v79 = vld [vmem:[%s0 + $0x8] sm:$0xff]
    %v80 = vpack.c.bf16 %v79, %v78
    %v81 = vld [vmem:[%s2] sm:$0xff]
    %v82 = vld [vmem:[%s2 + $0x8] sm:$0xff]
    %v83 = vld [vmem:[%s2 + $0x10] sm:$0xff]
    %v84 = vld [vmem:[%s2 + $0x18] sm:$0xff]
    %v85 = vld [vmem:[%s3] sm:$0x3]
    %v87 = vperm.slane %v85, 0
    %v88 = vperm.slane %v85, 1
    %v95 = vunpack.c.l.b16 %v81
    %v96 = vunpack.c.h.b16 %v81
    %v97 = vunpack.c.l.b16 %v82
    %v98 = vunpack.c.h.b16 %v82
    %v99 = vunpack.c.l.b16 %v83
    %v100 = vunpack.c.h.b16 %v83
    %v101 = vunpack.c.l.b16 %v84
    %v102 = vunpack.c.h.b16 %v84
    %v103 = vpack.c.b16 %v97, %v95
    %v104 = vpack.c.b16 %v98, %v96
    %v105 = vpack.c.b16 %v101, %v99
    %v106 = vpack.c.b16 %v102, %v100
    %vm111 = vcmask 261120
    %v113 = vsel %vm111, %v80, 0
    %115 = vmatpush.bf16.msra.mxu0 0
    %116 = vmatpush.bf16.msra.mxu0 0
    %117 = vmatpush.bf16.msra.mxu0 0
    %118 = vmatpush.bf16.msra.mxu0 0
    %119 = vmatpush.bf16.msra.mxu0 0
    %120 = vmatpush.bf16.msra.mxu0 0
    %121 = vmatpush.bf16.msra.mxu0 %v105
    %122 = vmatpush.bf16.msra.mxu0 %v103
    %123 = vmatmul.bf16.gmra.mxu0 %v113
    %v124 = vpop.f32.mrf.mxu0
    %v125 = vadd.f32 %v87, %v124
    %v126 = vpop.f32.mrf.mxu0
    %v127 = vadd.f32 %v87, %v126
    %128 = vdwg.mxu0
    %129 = vmatpush.bf16.msra.mxu0 0
    %130 = vmatpush.bf16.msra.mxu0 0
    %131 = vmatpush.bf16.msra.mxu0 0
    %132 = vmatpush.bf16.msra.mxu0 0
    %133 = vmatpush.bf16.msra.mxu0 0
    %134 = vmatpush.bf16.msra.mxu0 0
    %135 = vmatpush.bf16.msra.mxu0 %v106
    %136 = vmatpush.bf16.msra.mxu0 %v104
    %137 = vmatmul.bf16.gmra.mxu0 %v113
    %v138 = vpop.f32.mrf.mxu0
    %v139 = vadd.f32 %v88, %v138
    %v140 = vpop.f32.mrf.mxu0
    %v141 = vadd.f32 %v88, %v140
    %142 = vdwg.mxu0
    %v143 = vmax.f32 %v125, 0.0
    %v144 = vmax.f32 %v139, 0.0
    %v145 = vmax.f32 %v127, 0.0
    %v146 = vmax.f32 %v141, 0.0
    %v147 = vpack.c.bf16 %v145, %v143
    %v148 = vpack.c.bf16 %v146, %v144
    %v149 = vld [vmem:[#allocation2] sm:$0xff]
    %v150 = vld [vmem:[#allocation2 + $0x8] sm:$0xff]
    %v151 = vld [vmem:[#allocation2 + $0x10] sm:$0xff]
    %v152 = vld [vmem:[#allocation2 + $0x18] sm:$0xff]
    %v153 = vld [vmem:[#allocation2 + $0x20] sm:$0xff]
    %v154 = vld [vmem:[#allocation2 + $0x28] sm:$0xff]
    %v155 = vld [vmem:[#allocation2 + $0x30] sm:$0xff]
    %v156 = vld [vmem:[#allocation2 + $0x38] sm:$0xff]
    %v157 = vld [vmem:[#allocation2 + $0x40] sm:$0xff]
    %v158 = vld [vmem:[#allocation2 + $0x48] sm:$0xff]
    %v159 = vld [vmem:[#allocation2 + $0x50] sm:$0xff]
    %v160 = vld [vmem:[#allocation2 + $0x58] sm:$0xff]
    %v161 = vld [vmem:[#allocation2 + $0x60] sm:$0xff]
    %v162 = vld [vmem:[#allocation2 + $0x68] sm:$0xff]
    %v163 = vld [vmem:[#allocation2 + $0x70] sm:$0xff]
    %v164 = vld [vmem:[#allocation2 + $0x78] sm:$0xff]
    %v165 = vld [vmem:[#allocation2 + $0x80] sm:$0xff]
    %v166 = vld [vmem:[#allocation2 + $0x88] sm:$0xff]
    %v167 = vld [vmem:[#allocation2 + $0x90] sm:$0xff]
    %v168 = vld [vmem:[#allocation2 + $0x98] sm:$0xff]
    %v169 = vld [vmem:[#allocation2 + $0xa0] sm:$0xff]
    %v170 = vld [vmem:[#allocation2 + $0xa8] sm:$0xff]
    %v171 = vld [vmem:[#allocation2 + $0xb0] sm:$0xff]
    %v172 = vld [vmem:[#allocation2 + $0xb8] sm:$0xff]
    %v173 = vld [vmem:[#allocation2 + $0xc0] sm:$0xff]
    %v174 = vld [vmem:[#allocation2 + $0xc8] sm:$0xff]
    %v175 = vld [vmem:[#allocation2 + $0xd0] sm:$0xff]
    %v176 = vld [vmem:[#allocation2 + $0xd8] sm:$0xff]
    %v177 = vld [vmem:[#allocation2 + $0xe0] sm:$0xff]
    %v178 = vld [vmem:[#allocation2 + $0xe8] sm:$0xff]
    %v179 = vld [vmem:[#allocation2 + $0xf0] sm:$0xff]
    %v180 = vld [vmem:[#allocation2 + $0xf8] sm:$0xff]
    %v181 = vld [vmem:[#allocation2 + $0x100] sm:$0xff]
    %v182 = vld [vmem:[#allocation2 + $0x108] sm:$0xff]
    %v183 = vld [vmem:[#allocation2 + $0x110] sm:$0xff]
    %v184 = vld [vmem:[#allocation2 + $0x118] sm:$0xff]
    %v185 = vld [vmem:[#allocation2 + $0x120] sm:$0xff]
    %v186 = vld [vmem:[#allocation2 + $0x128] sm:$0xff]
    %v187 = vld [vmem:[#allocation2 + $0x130] sm:$0xff]
    %v188 = vld [vmem:[#allocation2 + $0x138] sm:$0xff]
    %v189 = vld [vmem:[#allocation2 + $0x140] sm:$0xff]
    %v190 = vld [vmem:[#allocation2 + $0x148] sm:$0xff]
    %v191 = vld [vmem:[#allocation2 + $0x150] sm:$0xff]
    %v192 = vld [vmem:[#allocation2 + $0x158] sm:$0xff]
    %v193 = vld [vmem:[#allocation2 + $0x160] sm:$0xff]
    %v194 = vld [vmem:[#allocation2 + $0x168] sm:$0xff]
    %v195 = vld [vmem:[#allocation2 + $0x170] sm:$0xff]
    %v196 = vld [vmem:[#allocation2 + $0x178] sm:$0xff]
    %v197 = vld [vmem:[#allocation2 + $0x180] sm:$0xff]
    %v198 = vld [vmem:[#allocation2 + $0x188] sm:$0xff]
    %v199 = vld [vmem:[#allocation2 + $0x190] sm:$0xff]
    %v200 = vld [vmem:[#allocation2 + $0x198] sm:$0xff]
    %v201 = vld [vmem:[#allocation2 + $0x1a0] sm:$0xff]
    %v202 = vld [vmem:[#allocation2 + $0x1a8] sm:$0xff]
    %v203 = vld [vmem:[#allocation2 + $0x1b0] sm:$0xff]
    %v204 = vld [vmem:[#allocation2 + $0x1b8] sm:$0xff]
    %v205 = vld [vmem:[#allocation2 + $0x1c0] sm:$0xff]
    %v206 = vld [vmem:[#allocation2 + $0x1c8] sm:$0xff]
    %v207 = vld [vmem:[#allocation2 + $0x1d0] sm:$0xff]
    %v208 = vld [vmem:[#allocation2 + $0x1d8] sm:$0xff]
    %v209 = vld [vmem:[#allocation2 + $0x1e0] sm:$0xff]
    %v210 = vld [vmem:[#allocation2 + $0x1e8] sm:$0xff]
    %v211 = vld [vmem:[#allocation2 + $0x1f0] sm:$0xff]
    %v212 = vld [vmem:[#allocation2 + $0x1f8] sm:$0xff]
    %v213 = vld [vmem:[%s1] sm:$0xff]
    %v214 = vld [vmem:[%s1 + $0x8] sm:$0xff]
    %v215 = vld [vmem:[#allocation4] sm:$0xff]
    %v216 = vld [vmem:[#allocation4 + $0x8] sm:$0xff]
    %v217 = vld [vmem:[#allocation4 + $0x10] sm:$0xff]
    %v218 = vld [vmem:[#allocation4 + $0x18] sm:$0xff]
    %220 = vset.pattern.permute.xlu0 0
    %221 = vperm.xlu0 %220, %v213
    %v222 = vpop.permute.xlu0 %221
    %225 = vset.pattern.permute.xlu0 0
    %226 = vperm.xlu0 %225, %v214
    %v227 = vpop.permute.xlu0 %226
    %v229 = vperm.slane %v215, 0
    %v230 = vperm.slane %v216, 0
    %v231 = vperm.slane %v217, 0
    %v232 = vperm.slane %v218, 0
    %v233 = vmul.f32 %v222, %v229
    %v234 = vmul.f32 %v222, %v230
    %v235 = vmul.f32 %v222, %v231
    %v236 = vmul.f32 %v222, %v232
    %v237 = vmul.f32 %v227, %v229
    %v238 = vmul.f32 %v227, %v230
    %v239 = vmul.f32 %v227, %v231
    %v240 = vmul.f32 %v227, %v232
    %v305 = vunpack.c.l.b16 %v149
    %v306 = vunpack.c.h.b16 %v149
    %v307 = vunpack.c.l.b16 %v150
    %v308 = vunpack.c.h.b16 %v150
    %v309 = vunpack.c.l.b16 %v151
    %v310 = vunpack.c.h.b16 %v151
    %v311 = vunpack.c.l.b16 %v152
    %v312 = vunpack.c.h.b16 %v152
    %v313 = vunpack.c.l.b16 %v153
    %v314 = vunpack.c.h.b16 %v153
    %v315 = vunpack.c.l.b16 %v154
    %v316 = vunpack.c.h.b16 %v154
    %v317 = vunpack.c.l.b16 %v155
    %v318 = vunpack.c.h.b16 %v155
    %v319 = vunpack.c.l.b16 %v156
    %v320 = vunpack.c.h.b16 %v156
    %v321 = vunpack.c.l.b16 %v157
    %v322 = vunpack.c.h.b16 %v157
    %v323 = vunpack.c.l.b16 %v158
    %v324 = vunpack.c.h.b16 %v158
    %v325 = vunpack.c.l.b16 %v159
    %v326 = vunpack.c.h.b16 %v159
    %v327 = vunpack.c.l.b16 %v160
    %v328 = vunpack.c.h.b16 %v160
    %v329 = vunpack.c.l.b16 %v161
    %v330 = vunpack.c.h.b16 %v161
    %v331 = vunpack.c.l.b16 %v162
    %v332 = vunpack.c.h.b16 %v162
    %v333 = vunpack.c.l.b16 %v163
    %v334 = vunpack.c.h.b16 %v163
    %v335 = vunpack.c.l.b16 %v164
    %v336 = vunpack.c.h.b16 %v164
    %v337 = vunpack.c.l.b16 %v165
    %v338 = vunpack.c.h.b16 %v165
    %v339 = vunpack.c.l.b16 %v166
    %v340 = vunpack.c.h.b16 %v166
    %v341 = vunpack.c.l.b16 %v167
    %v342 = vunpack.c.h.b16 %v167
    %v343 = vunpack.c.l.b16 %v168
    %v344 = vunpack.c.h.b16 %v168
    %v345 = vunpack.c.l.b16 %v169
    %v346 = vunpack.c.h.b16 %v169
    %v347 = vunpack.c.l.b16 %v170
    %v348 = vunpack.c.h.b16 %v170
    %v349 = vunpack.c.l.b16 %v171
    %v350 = vunpack.c.h.b16 %v171
    %v351 = vunpack.c.l.b16 %v172
    %v352 = vunpack.c.h.b16 %v172
    %v353 = vunpack.c.l.b16 %v173
    %v354 = vunpack.c.h.b16 %v173
    %v355 = vunpack.c.l.b16 %v174
    %v356 = vunpack.c.h.b16 %v174
    %v357 = vunpack.c.l.b16 %v175
    %v358 = vunpack.c.h.b16 %v175
    %v359 = vunpack.c.l.b16 %v176
    %v360 = vunpack.c.h.b16 %v176
    %v361 = vunpack.c.l.b16 %v177
    %v362 = vunpack.c.h.b16 %v177
    %v363 = vunpack.c.l.b16 %v178
    %v364 = vunpack.c.h.b16 %v178
    %v365 = vunpack.c.l.b16 %v179
    %v366 = vunpack.c.h.b16 %v179
    %v367 = vunpack.c.l.b16 %v180
    %v368 = vunpack.c.h.b16 %v180
    %v369 = vunpack.c.l.b16 %v181
    %v370 = vunpack.c.h.b16 %v181
    %v371 = vunpack.c.l.b16 %v182
    %v372 = vunpack.c.h.b16 %v182
    %v373 = vunpack.c.l.b16 %v183
    %v374 = vunpack.c.h.b16 %v183
    %v375 = vunpack.c.l.b16 %v184
    %v376 = vunpack.c.h.b16 %v184
    %v377 = vunpack.c.l.b16 %v185
    %v378 = vunpack.c.h.b16 %v185
    %v379 = vunpack.c.l.b16 %v186
    %v380 = vunpack.c.h.b16 %v186
    %v381 = vunpack.c.l.b16 %v187
    %v382 = vunpack.c.h.b16 %v187
    %v383 = vunpack.c.l.b16 %v188
    %v384 = vunpack.c.h.b16 %v188
    %v385 = vunpack.c.l.b16 %v189
    %v386 = vunpack.c.h.b16 %v189
    %v387 = vunpack.c.l.b16 %v190
    %v388 = vunpack.c.h.b16 %v190
    %v389 = vunpack.c.l.b16 %v191
    %v390 = vunpack.c.h.b16 %v191
    %v391 = vunpack.c.l.b16 %v192
    %v392 = vunpack.c.h.b16 %v192
    %v393 = vunpack.c.l.b16 %v193
    %v394 = vunpack.c.h.b16 %v193
    %v395 = vunpack.c.l.b16 %v194
    %v396 = vunpack.c.h.b16 %v194
    %v397 = vunpack.c.l.b16 %v195
    %v398 = vunpack.c.h.b16 %v195
    %v399 = vunpack.c.l.b16 %v196
    %v400 = vunpack.c.h.b16 %v196
    %v401 = vunpack.c.l.b16 %v197
    %v402 = vunpack.c.h.b16 %v197
    %v403 = vunpack.c.l.b16 %v198
    %v404 = vunpack.c.h.b16 %v198
    %v405 = vunpack.c.l.b16 %v199
    %v406 = vunpack.c.h.b16 %v199
    %v407 = vunpack.c.l.b16 %v200
    %v408 = vunpack.c.h.b16 %v200
    %v409 = vunpack.c.l.b16 %v201
    %v410 = vunpack.c.h.b16 %v201
    %v411 = vunpack.c.l.b16 %v202
    %v412 = vunpack.c.h.b16 %v202
    %v413 = vunpack.c.l.b16 %v203
    %v414 = vunpack.c.h.b16 %v203
    %v415 = vunpack.c.l.b16 %v204
    %v416 = vunpack.c.h.b16 %v204
    %v417 = vunpack.c.l.b16 %v205
    %v418 = vunpack.c.h.b16 %v205
    %v419 = vunpack.c.l.b16 %v206
    %v420 = vunpack.c.h.b16 %v206
    %v421 = vunpack.c.l.b16 %v207
    %v422 = vunpack.c.h.b16 %v207
    %v423 = vunpack.c.l.b16 %v208
    %v424 = vunpack.c.h.b16 %v208
    %v425 = vunpack.c.l.b16 %v209
    %v426 = vunpack.c.h.b16 %v209
    %v427 = vunpack.c.l.b16 %v210
    %v428 = vunpack.c.h.b16 %v210
    %v429 = vunpack.c.l.b16 %v211
    %v430 = vunpack.c.h.b16 %v211
    %v431 = vunpack.c.l.b16 %v212
    %v432 = vunpack.c.h.b16 %v212
    %v433 = vpack.c.b16 %v309, %v305
    %v434 = vpack.c.b16 %v310, %v306
    %v435 = vpack.c.b16 %v311, %v307
    %v436 = vpack.c.b16 %v312, %v308
    %v437 = vpack.c.b16 %v317, %v313
    %v438 = vpack.c.b16 %v318, %v314
    %v439 = vpack.c.b16 %v319, %v315
    %v440 = vpack.c.b16 %v320, %v316
    %v441 = vpack.c.b16 %v325, %v321
    %v442 = vpack.c.b16 %v326, %v322
    %v443 = vpack.c.b16 %v327, %v323
    %v444 = vpack.c.b16 %v328, %v324
    %v445 = vpack.c.b16 %v333, %v329
    %v446 = vpack.c.b16 %v334, %v330
    %v447 = vpack.c.b16 %v335, %v331
    %v448 = vpack.c.b16 %v336, %v332
    %v449 = vpack.c.b16 %v341, %v337
    %v450 = vpack.c.b16 %v342, %v338
    %v451 = vpack.c.b16 %v343, %v339
    %v452 = vpack.c.b16 %v344, %v340
    %v453 = vpack.c.b16 %v349, %v345
    %v454 = vpack.c.b16 %v350, %v346
    %v455 = vpack.c.b16 %v351, %v347
    %v456 = vpack.c.b16 %v352, %v348
    %v457 = vpack.c.b16 %v357, %v353
    %v458 = vpack.c.b16 %v358, %v354
    %v459 = vpack.c.b16 %v359, %v355
    %v460 = vpack.c.b16 %v360, %v356
    %v461 = vpack.c.b16 %v365, %v361
    %v462 = vpack.c.b16 %v366, %v362
    %v463 = vpack.c.b16 %v367, %v363
    %v464 = vpack.c.b16 %v368, %v364
    %v465 = vpack.c.b16 %v373, %v369
    %v466 = vpack.c.b16 %v374, %v370
    %v467 = vpack.c.b16 %v375, %v371
    %v468 = vpack.c.b16 %v376, %v372
    %v469 = vpack.c.b16 %v381, %v377
    %v470 = vpack.c.b16 %v382, %v378
    %v471 = vpack.c.b16 %v383, %v379
    %v472 = vpack.c.b16 %v384, %v380
    %v473 = vpack.c.b16 %v389, %v385
    %v474 = vpack.c.b16 %v390, %v386
    %v475 = vpack.c.b16 %v391, %v387
    %v476 = vpack.c.b16 %v392, %v388
    %v477 = vpack.c.b16 %v397, %v393
    %v478 = vpack.c.b16 %v398, %v394
    %v479 = vpack.c.b16 %v399, %v395
    %v480 = vpack.c.b16 %v400, %v396
    %v481 = vpack.c.b16 %v405, %v401
    %v482 = vpack.c.b16 %v406, %v402
    %v483 = vpack.c.b16 %v407, %v403
    %v484 = vpack.c.b16 %v408, %v404
    %v485 = vpack.c.b16 %v413, %v409
    %v486 = vpack.c.b16 %v414, %v410
    %v487 = vpack.c.b16 %v415, %v411
    %v488 = vpack.c.b16 %v416, %v412
    %v489 = vpack.c.b16 %v421, %v417
    %v490 = vpack.c.b16 %v422, %v418
    %v491 = vpack.c.b16 %v423, %v419
    %v492 = vpack.c.b16 %v424, %v420
    %v493 = vpack.c.b16 %v429, %v425
    %v494 = vpack.c.b16 %v430, %v426
    %v495 = vpack.c.b16 %v431, %v427
    %v496 = vpack.c.b16 %v432, %v428
    %561 = vmatpush.bf16.msra.mxu0 %v461
    %562 = vmatpush.bf16.msra.mxu0 %v457
    %563 = vmatpush.bf16.msra.mxu0 %v453
    %564 = vmatpush.bf16.msra.mxu0 %v449
    %565 = vmatpush.bf16.msra.mxu0 %v445
    %566 = vmatpush.bf16.msra.mxu0 %v441
    %567 = vmatpush.bf16.msra.mxu0 %v437
    %568 = vmatpush.bf16.msra.mxu0 %v433
    %569 = vmatmul.bf16.gmra.mxu0 %v147
    %v570 = vpop.f32.mrf.mxu0
    %v571 = vadd.f32 %v233, %v570
    %v572 = vpop.f32.mrf.mxu0
    %v573 = vadd.f32 %v237, %v572
    %574 = vdwg.mxu0
    %575 = vmatpush.bf16.msra.mxu0 %v493
    %576 = vmatpush.bf16.msra.mxu0 %v489
    %577 = vmatpush.bf16.msra.mxu0 %v485
    %578 = vmatpush.bf16.msra.mxu0 %v481
    %579 = vmatpush.bf16.msra.mxu0 %v477
    %580 = vmatpush.bf16.msra.mxu0 %v473
    %581 = vmatpush.bf16.msra.mxu0 %v469
    %582 = vmatpush.bf16.msra.mxu0 %v465
    %583 = vmatmul.bf16.gmra.mxu0 %v148
    %v584 = vpop.f32.mrf.mxu0
    %v585 = vadd.f32 %v571, %v584
    %v586 = vpop.f32.mrf.mxu0
    %v587 = vadd.f32 %v573, %v586
    %588 = vdwg.mxu0
    %589 = vmatpush.bf16.msra.mxu0 %v462
    %590 = vmatpush.bf16.msra.mxu0 %v458
    %591 = vmatpush.bf16.msra.mxu0 %v454
    %592 = vmatpush.bf16.msra.mxu0 %v450
    %593 = vmatpush.bf16.msra.mxu0 %v446
    %594 = vmatpush.bf16.msra.mxu0 %v442
    %595 = vmatpush.bf16.msra.mxu0 %v438
    %596 = vmatpush.bf16.msra.mxu0 %v434
    %597 = vmatmul.bf16.gmra.mxu0 %v147
    %v598 = vpop.f32.mrf.mxu0
    %v599 = vadd.f32 %v234, %v598
    %v600 = vpop.f32.mrf.mxu0
    %v601 = vadd.f32 %v238, %v600
    %602 = vdwg.mxu0
    %603 = vmatpush.bf16.msra.mxu0 %v494
    %604 = vmatpush.bf16.msra.mxu0 %v490
    %605 = vmatpush.bf16.msra.mxu0 %v486
    %606 = vmatpush.bf16.msra.mxu0 %v482
    %607 = vmatpush.bf16.msra.mxu0 %v478
    %608 = vmatpush.bf16.msra.mxu0 %v474
    %609 = vmatpush.bf16.msra.mxu0 %v470
    %610 = vmatpush.bf16.msra.mxu0 %v466
    %611 = vmatmul.bf16.gmra.mxu0 %v148
    %v612 = vpop.f32.mrf.mxu0
    %v613 = vadd.f32 %v599, %v612
    %v614 = vpop.f32.mrf.mxu0
    %v615 = vadd.f32 %v601, %v614
    %616 = vdwg.mxu0
    %617 = vmatpush.bf16.msra.mxu0 %v463
    %618 = vmatpush.bf16.msra.mxu0 %v459
    %619 = vmatpush.bf16.msra.mxu0 %v455
    %620 = vmatpush.bf16.msra.mxu0 %v451
    %621 = vmatpush.bf16.msra.mxu0 %v447
    %622 = vmatpush.bf16.msra.mxu0 %v443
    %623 = vmatpush.bf16.msra.mxu0 %v439
    %624 = vmatpush.bf16.msra.mxu0 %v435
    %625 = vmatmul.bf16.gmra.mxu0 %v147
    %v626 = vpop.f32.mrf.mxu0
    %v627 = vadd.f32 %v235, %v626
    %v628 = vpop.f32.mrf.mxu0
    %v629 = vadd.f32 %v239, %v628
    %630 = vdwg.mxu0
    %631 = vmatpush.bf16.msra.mxu0 %v495
    %632 = vmatpush.bf16.msra.mxu0 %v491
    %633 = vmatpush.bf16.msra.mxu0 %v487
    %634 = vmatpush.bf16.msra.mxu0 %v483
    %635 = vmatpush.bf16.msra.mxu0 %v479
    %636 = vmatpush.bf16.msra.mxu0 %v475
    %637 = vmatpush.bf16.msra.mxu0 %v471
    %638 = vmatpush.bf16.msra.mxu0 %v467
    %639 = vmatmul.bf16.gmra.mxu0 %v148
    %v640 = vpop.f32.mrf.mxu0
    %v641 = vadd.f32 %v627, %v640
    %v642 = vpop.f32.mrf.mxu0
    %v643 = vadd.f32 %v629, %v642
    %644 = vdwg.mxu0
    %645 = vmatpush.bf16.msra.mxu0 %v464
    %646 = vmatpush.bf16.msra.mxu0 %v460
    %647 = vmatpush.bf16.msra.mxu0 %v456
    %648 = vmatpush.bf16.msra.mxu0 %v452
    %649 = vmatpush.bf16.msra.mxu0 %v448
    %650 = vmatpush.bf16.msra.mxu0 %v444
    %651 = vmatpush.bf16.msra.mxu0 %v440
    %652 = vmatpush.bf16.msra.mxu0 %v436
    %653 = vmatmul.bf16.gmra.mxu0 %v147
    %v654 = vpop.f32.mrf.mxu0
    %v655 = vadd.f32 %v236, %v654
    %v656 = vpop.f32.mrf.mxu0
    %v657 = vadd.f32 %v240, %v656
    %658 = vdwg.mxu0
    %659 = vmatpush.bf16.msra.mxu0 %v496
    %660 = vmatpush.bf16.msra.mxu0 %v492
    %661 = vmatpush.bf16.msra.mxu0 %v488
    %662 = vmatpush.bf16.msra.mxu0 %v484
    %663 = vmatpush.bf16.msra.mxu0 %v480
    %664 = vmatpush.bf16.msra.mxu0 %v476
    %665 = vmatpush.bf16.msra.mxu0 %v472
    %666 = vmatpush.bf16.msra.mxu0 %v468
    %667 = vmatmul.bf16.gmra.mxu0 %v148
    %v668 = vpop.f32.mrf.mxu0
    %v669 = vadd.f32 %v655, %v668
    %v670 = vpop.f32.mrf.mxu0
    %v671 = vadd.f32 %v657, %v670
    %672 = vdwg.mxu0
    %673 = vset.pattern.permute.xlu0 1
    %674 = vperm.xlu0 %673, %v213
    %v675 = vpop.permute.xlu0 %674
    %677 = vset.pattern.permute.xlu0 1
    %678 = vperm.xlu0 %677, %v214
    %v679 = vpop.permute.xlu0 %678
    %v681 = vperm.slane %v215, 1
    %v682 = vperm.slane %v216, 1
    %v683 = vperm.slane %v217, 1
    %v684 = vperm.slane %v218, 1
    %v685 = vmul.f32 %v675, %v681
    %v686 = vmul.f32 %v675, %v682
    %v687 = vmul.f32 %v675, %v683
    %v688 = vmul.f32 %v675, %v684
    %v689 = vmul.f32 %v679, %v681
    %v690 = vmul.f32 %v679, %v682
    %v691 = vmul.f32 %v679, %v683
    %v692 = vmul.f32 %v679, %v684
    %v693 = vadd.f32 %v585, %v685
    %v694 = vadd.f32 %v613, %v686
    %v695 = vadd.f32 %v641, %v687
    %v696 = vadd.f32 %v669, %v688
    %v697 = vadd.f32 %v587, %v689
    %v698 = vadd.f32 %v615, %v690
    %v699 = vadd.f32 %v643, %v691
    %v700 = vadd.f32 %v671, %v692
    %701 = vset.pattern.permute.xlu0 2
    %702 = vperm.xlu0 %701, %v213
    %v703 = vpop.permute.xlu0 %702
    %705 = vset.pattern.permute.xlu0 2
    %706 = vperm.xlu0 %705, %v214
    %v707 = vpop.permute.xlu0 %706
    %v709 = vperm.slane %v215, 2
    %v710 = vperm.slane %v216, 2
    %v711 = vperm.slane %v217, 2
    %v712 = vperm.slane %v218, 2
    %v713 = vmul.f32 %v703, %v709
    %v714 = vmul.f32 %v703, %v710
    %v715 = vmul.f32 %v703, %v711
    %v716 = vmul.f32 %v703, %v712
    %v717 = vmul.f32 %v707, %v709
    %v718 = vmul.f32 %v707, %v710
    %v719 = vmul.f32 %v707, %v711
    %v720 = vmul.f32 %v707, %v712
    %v721 = vadd.f32 %v693, %v713
    %v722 = vadd.f32 %v694, %v714
    %v723 = vadd.f32 %v695, %v715
    %v724 = vadd.f32 %v696, %v716
    %v725 = vadd.f32 %v697, %v717
    %v726 = vadd.f32 %v698, %v718
    %v727 = vadd.f32 %v699, %v719
    %v728 = vadd.f32 %v700, %v720
    %729 = vset.pattern.permute.xlu0 3
    %730 = vperm.xlu0 %729, %v213
    %v731 = vpop.permute.xlu0 %730
    %733 = vset.pattern.permute.xlu0 3
    %734 = vperm.xlu0 %733, %v214
    %v735 = vpop.permute.xlu0 %734
    %v737 = vperm.slane %v215, 3
    %v738 = vperm.slane %v216, 3
    %v739 = vperm.slane %v217, 3
    %v740 = vperm.slane %v218, 3
    %v741 = vmul.f32 %v731, %v737
    %v742 = vmul.f32 %v731, %v738
    %v743 = vmul.f32 %v731, %v739
    %v744 = vmul.f32 %v731, %v740
    %v745 = vmul.f32 %v735, %v737
    %v746 = vmul.f32 %v735, %v738
    %v747 = vmul.f32 %v735, %v739
    %v748 = vmul.f32 %v735, %v740
    %v749 = vadd.f32 %v721, %v741
    %v750 = vadd.f32 %v722, %v742
    %v751 = vadd.f32 %v723, %v743
    %v752 = vadd.f32 %v724, %v744
    %v753 = vadd.f32 %v725, %v745
    %v754 = vadd.f32 %v726, %v746
    %v755 = vadd.f32 %v727, %v747
    %v756 = vadd.f32 %v728, %v748
    %757 = vset.pattern.permute.xlu0 4
    %758 = vperm.xlu0 %757, %v213
    %v759 = vpop.permute.xlu0 %758
    %761 = vset.pattern.permute.xlu0 4
    %762 = vperm.xlu0 %761, %v214
    %v763 = vpop.permute.xlu0 %762
    %v765 = vperm.slane %v215, 4
    %v766 = vperm.slane %v216, 4
    %v767 = vperm.slane %v217, 4
    %v768 = vperm.slane %v218, 4
    %v769 = vmul.f32 %v759, %v765
    %v770 = vmul.f32 %v759, %v766
    %v771 = vmul.f32 %v759, %v767
    %v772 = vmul.f32 %v759, %v768
    %v773 = vmul.f32 %v763, %v765
    %v774 = vmul.f32 %v763, %v766
    %v775 = vmul.f32 %v763, %v767
    %v776 = vmul.f32 %v763, %v768
    %v777 = vadd.f32 %v749, %v769
    %v778 = vadd.f32 %v750, %v770
    %v779 = vadd.f32 %v751, %v771
    %v780 = vadd.f32 %v752, %v772
    %v781 = vadd.f32 %v753, %v773
    %v782 = vadd.f32 %v754, %v774
    %v783 = vadd.f32 %v755, %v775
    %v784 = vadd.f32 %v756, %v776
    %785 = vset.pattern.permute.xlu0 5
    %786 = vperm.xlu0 %785, %v213
    %v787 = vpop.permute.xlu0 %786
    %789 = vset.pattern.permute.xlu0 5
    %790 = vperm.xlu0 %789, %v214
    %v791 = vpop.permute.xlu0 %790
    %v793 = vperm.slane %v215, 5
    %v794 = vperm.slane %v216, 5
    %v795 = vperm.slane %v217, 5
    %v796 = vperm.slane %v218, 5
    %v797 = vmul.f32 %v787, %v793
    %v798 = vmul.f32 %v787, %v794
    %v799 = vmul.f32 %v787, %v795
    %v800 = vmul.f32 %v787, %v796
    %v801 = vmul.f32 %v791, %v793
    %v802 = vmul.f32 %v791, %v794
    %v803 = vmul.f32 %v791, %v795
    %v804 = vmul.f32 %v791, %v796
    %v805 = vadd.f32 %v777, %v797
    %v806 = vadd.f32 %v778, %v798
    %v807 = vadd.f32 %v779, %v799
    %v808 = vadd.f32 %v780, %v800
    %v809 = vadd.f32 %v781, %v801
    %v810 = vadd.f32 %v782, %v802
    %v811 = vadd.f32 %v783, %v803
    %v812 = vadd.f32 %v784, %v804
    %813 = vset.pattern.permute.xlu0 6
    %814 = vperm.xlu0 %813, %v213
    %v815 = vpop.permute.xlu0 %814
    %817 = vset.pattern.permute.xlu0 6
    %818 = vperm.xlu0 %817, %v214
    %v819 = vpop.permute.xlu0 %818
    %v821 = vperm.slane %v215, 6
    %v822 = vperm.slane %v216, 6
    %v823 = vperm.slane %v217, 6
    %v824 = vperm.slane %v218, 6
    %v825 = vmul.f32 %v815, %v821
    %v826 = vmul.f32 %v815, %v822
    %v827 = vmul.f32 %v815, %v823
    %v828 = vmul.f32 %v815, %v824
    %v829 = vmul.f32 %v819, %v821
    %v830 = vmul.f32 %v819, %v822
    %v831 = vmul.f32 %v819, %v823
    %v832 = vmul.f32 %v819, %v824
    %v833 = vadd.f32 %v805, %v825
    %v834 = vadd.f32 %v806, %v826
    %v835 = vadd.f32 %v807, %v827
    %v836 = vadd.f32 %v808, %v828
    %v837 = vadd.f32 %v809, %v829
    %v838 = vadd.f32 %v810, %v830
    %v839 = vadd.f32 %v811, %v831
    %v840 = vadd.f32 %v812, %v832
    %841 = vset.pattern.permute.xlu0 7
    %842 = vperm.xlu0 %841, %v213
    %v843 = vpop.permute.xlu0 %842
    %845 = vset.pattern.permute.xlu0 7
    %846 = vperm.xlu0 %845, %v214
    %v847 = vpop.permute.xlu0 %846
    %v849 = vperm.slane %v215, 7
    %v850 = vperm.slane %v216, 7
    %v851 = vperm.slane %v217, 7
    %v852 = vperm.slane %v218, 7
    %v853 = vmul.f32 %v843, %v849
    %v854 = vmul.f32 %v843, %v850
    %v855 = vmul.f32 %v843, %v851
    %v856 = vmul.f32 %v843, %v852
    %v857 = vmul.f32 %v847, %v849
    %v858 = vmul.f32 %v847, %v850
    %v859 = vmul.f32 %v847, %v851
    %v860 = vmul.f32 %v847, %v852
    %v861 = vadd.f32 %v833, %v853
    %v862 = vadd.f32 %v834, %v854
    %v863 = vadd.f32 %v835, %v855
    %v864 = vadd.f32 %v836, %v856
    %v865 = vadd.f32 %v837, %v857
    %v866 = vadd.f32 %v838, %v858
    %v867 = vadd.f32 %v839, %v859
    %v868 = vadd.f32 %v840, %v860
    %v869 = vld [vmem:[%s6] sm:$0xf]
    %v871 = vperm.slane %v869, 0
    %v872 = vperm.slane %v869, 1
    %v873 = vperm.slane %v869, 2
    %v874 = vperm.slane %v869, 3
    %v879 = vadd.f32 %v861, %v871
    %v880 = vadd.f32 %v862, %v872
    %v881 = vadd.f32 %v863, %v873
    %v882 = vadd.f32 %v864, %v874
    %v883 = vadd.f32 %v865, %v871
    %v884 = vadd.f32 %v866, %v872
    %v885 = vadd.f32 %v867, %v873
    %v886 = vadd.f32 %v868, %v874
    %v887 = vmax.f32 %v879, 0.0
    %v888 = vmax.f32 %v880, 0.0
    %v889 = vmax.f32 %v881, 0.0
    %v890 = vmax.f32 %v882, 0.0
    %v891 = vmax.f32 %v883, 0.0
    %v892 = vmax.f32 %v884, 0.0
    %v893 = vmax.f32 %v885, 0.0
    %v894 = vmax.f32 %v886, 0.0
    %v895 = vpack.c.bf16 %v891, %v887
    %v896 = vpack.c.bf16 %v892, %v888
    %v897 = vpack.c.bf16 %v893, %v889
    %v898 = vpack.c.bf16 %v894, %v890
    %v899 = vld [vmem:[#allocation6] sm:$0xf]
    %v900 = vld [vmem:[#allocation6 + $0x4] sm:$0xf]
    %v901 = vld [vmem:[#allocation6 + $0x8] sm:$0xf]
    %v902 = vld [vmem:[#allocation6 + $0xc] sm:$0xf]
    %v903 = vld [vmem:[#allocation6 + $0x10] sm:$0xf]
    %v904 = vld [vmem:[#allocation6 + $0x14] sm:$0xf]
    %v905 = vld [vmem:[#allocation6 + $0x18] sm:$0xf]
    %v906 = vld [vmem:[#allocation6 + $0x1c] sm:$0xf]
    %v907 = vld [vmem:[#allocation6 + $0x20] sm:$0xf]
    %v908 = vld [vmem:[#allocation6 + $0x24] sm:$0xf]
    %v909 = vld [vmem:[#allocation6 + $0x28] sm:$0xf]
    %v910 = vld [vmem:[#allocation6 + $0x2c] sm:$0xf]
    %v911 = vld [vmem:[#allocation6 + $0x30] sm:$0xf]
    %v912 = vld [vmem:[#allocation6 + $0x34] sm:$0xf]
    %v913 = vld [vmem:[#allocation6 + $0x38] sm:$0xf]
    %v914 = vld [vmem:[#allocation6 + $0x3c] sm:$0xf]
    %v915 = vld [vmem:[#allocation6 + $0x40] sm:$0xf]
    %v916 = vld [vmem:[#allocation6 + $0x44] sm:$0xf]
    %v917 = vld [vmem:[#allocation6 + $0x48] sm:$0xf]
    %v918 = vld [vmem:[#allocation6 + $0x4c] sm:$0xf]
    %v919 = vld [vmem:[#allocation6 + $0x50] sm:$0xf]
    %v920 = vld [vmem:[#allocation6 + $0x54] sm:$0xf]
    %v921 = vld [vmem:[#allocation6 + $0x58] sm:$0xf]
    %v922 = vld [vmem:[#allocation6 + $0x5c] sm:$0xf]
    %v923 = vld [vmem:[#allocation6 + $0x60] sm:$0xf]
    %v924 = vld [vmem:[#allocation6 + $0x64] sm:$0xf]
    %v925 = vld [vmem:[#allocation6 + $0x68] sm:$0xf]
    %v926 = vld [vmem:[#allocation6 + $0x6c] sm:$0xf]
    %v927 = vld [vmem:[#allocation6 + $0x70] sm:$0xf]
    %v928 = vld [vmem:[#allocation6 + $0x74] sm:$0xf]
    %v929 = vld [vmem:[#allocation6 + $0x78] sm:$0xf]
    %v930 = vld [vmem:[#allocation6 + $0x7c] sm:$0xf]
    %v931 = vld [vmem:[#allocation6 + $0x80] sm:$0xf]
    %v932 = vld [vmem:[#allocation6 + $0x84] sm:$0xf]
    %v933 = vld [vmem:[#allocation6 + $0x88] sm:$0xf]
    %v934 = vld [vmem:[#allocation6 + $0x8c] sm:$0xf]
    %v935 = vld [vmem:[#allocation6 + $0x90] sm:$0xf]
    %v936 = vld [vmem:[#allocation6 + $0x94] sm:$0xf]
    %v937 = vld [vmem:[#allocation6 + $0x98] sm:$0xf]
    %v938 = vld [vmem:[#allocation6 + $0x9c] sm:$0xf]
    %v939 = vld [vmem:[#allocation6 + $0xa0] sm:$0xf]
    %v940 = vld [vmem:[#allocation6 + $0xa4] sm:$0xf]
    %v941 = vld [vmem:[#allocation6 + $0xa8] sm:$0xf]
    %v942 = vld [vmem:[#allocation6 + $0xac] sm:$0xf]
    %v943 = vld [vmem:[#allocation6 + $0xb0] sm:$0xf]
    %v944 = vld [vmem:[#allocation6 + $0xb4] sm:$0xf]
    %v945 = vld [vmem:[#allocation6 + $0xb8] sm:$0xf]
    %v946 = vld [vmem:[#allocation6 + $0xbc] sm:$0xf]
    %v947 = vld [vmem:[#allocation6 + $0xc0] sm:$0xf]
    %v948 = vld [vmem:[#allocation6 + $0xc4] sm:$0xf]
    %v949 = vld [vmem:[#allocation6 + $0xc8] sm:$0xf]
    %v950 = vld [vmem:[#allocation6 + $0xcc] sm:$0xf]
    %v951 = vld [vmem:[#allocation6 + $0xd0] sm:$0xf]
    %v952 = vld [vmem:[#allocation6 + $0xd4] sm:$0xf]
    %v953 = vld [vmem:[#allocation6 + $0xd8] sm:$0xf]
    %v954 = vld [vmem:[#allocation6 + $0xdc] sm:$0xf]
    %v955 = vld [vmem:[#allocation6 + $0xe0] sm:$0xf]
    %v956 = vld [vmem:[#allocation6 + $0xe4] sm:$0xf]
    %v957 = vld [vmem:[#allocation6 + $0xe8] sm:$0xf]
    %v958 = vld [vmem:[#allocation6 + $0xec] sm:$0xf]
    %v959 = vld [vmem:[#allocation6 + $0xf0] sm:$0xf]
    %v960 = vld [vmem:[#allocation6 + $0xf4] sm:$0xf]
    %v961 = vld [vmem:[#allocation6 + $0xf8] sm:$0xf]
    %v962 = vld [vmem:[#allocation6 + $0xfc] sm:$0xf]
    %v963 = vld [vmem:[%s8] sm:$0x1]
    %v965 = vperm.slane %v963, 0
    %v1031 = vunpack.c.l.b16 %v899
    %v1032 = vunpack.c.l.b16 %v900
    %v1033 = vunpack.c.l.b16 %v901
    %v1034 = vunpack.c.l.b16 %v902
    %v1035 = vunpack.c.l.b16 %v903
    %v1036 = vunpack.c.l.b16 %v904
    %v1037 = vunpack.c.l.b16 %v905
    %v1038 = vunpack.c.l.b16 %v906
    %v1039 = vunpack.c.l.b16 %v907
    %v1040 = vunpack.c.l.b16 %v908
    %v1041 = vunpack.c.l.b16 %v909
    %v1042 = vunpack.c.l.b16 %v910
    %v1043 = vunpack.c.l.b16 %v911
    %v1044 = vunpack.c.l.b16 %v912
    %v1045 = vunpack.c.l.b16 %v913
    %v1046 = vunpack.c.l.b16 %v914
    %v1047 = vunpack.c.l.b16 %v915
    %v1048 = vunpack.c.l.b16 %v916
    %v1049 = vunpack.c.l.b16 %v917
    %v1050 = vunpack.c.l.b16 %v918
    %v1051 = vunpack.c.l.b16 %v919
    %v1052 = vunpack.c.l.b16 %v920
    %v1053 = vunpack.c.l.b16 %v921
    %v1054 = vunpack.c.l.b16 %v922
    %v1055 = vunpack.c.l.b16 %v923
    %v1056 = vunpack.c.l.b16 %v924
    %v1057 = vunpack.c.l.b16 %v925
    %v1058 = vunpack.c.l.b16 %v926
    %v1059 = vunpack.c.l.b16 %v927
    %v1060 = vunpack.c.l.b16 %v928
    %v1061 = vunpack.c.l.b16 %v929
    %v1062 = vunpack.c.l.b16 %v930
    %v1063 = vunpack.c.l.b16 %v931
    %v1064 = vunpack.c.l.b16 %v932
    %v1065 = vunpack.c.l.b16 %v933
    %v1066 = vunpack.c.l.b16 %v934
    %v1067 = vunpack.c.l.b16 %v935
    %v1068 = vunpack.c.l.b16 %v936
    %v1069 = vunpack.c.l.b16 %v937
    %v1070 = vunpack.c.l.b16 %v938
    %v1071 = vunpack.c.l.b16 %v939
    %v1072 = vunpack.c.l.b16 %v940
    %v1073 = vunpack.c.l.b16 %v941
    %v1074 = vunpack.c.l.b16 %v942
    %v1075 = vunpack.c.l.b16 %v943
    %v1076 = vunpack.c.l.b16 %v944
    %v1077 = vunpack.c.l.b16 %v945
    %v1078 = vunpack.c.l.b16 %v946
    %v1079 = vunpack.c.l.b16 %v947
    %v1080 = vunpack.c.l.b16 %v948
    %v1081 = vunpack.c.l.b16 %v949
    %v1082 = vunpack.c.l.b16 %v950
    %v1083 = vunpack.c.l.b16 %v951
    %v1084 = vunpack.c.l.b16 %v952
    %v1085 = vunpack.c.l.b16 %v953
    %v1086 = vunpack.c.l.b16 %v954
    %v1087 = vunpack.c.l.b16 %v955
    %v1088 = vunpack.c.l.b16 %v956
    %v1089 = vunpack.c.l.b16 %v957
    %v1090 = vunpack.c.l.b16 %v958
    %v1091 = vunpack.c.l.b16 %v959
    %v1092 = vunpack.c.l.b16 %v960
    %v1093 = vunpack.c.l.b16 %v961
    %v1094 = vunpack.c.l.b16 %v962
    %v1095 = vpack.c.b16 %v1032, %v1031
    %v1096 = vpack.c.b16 %v1034, %v1033
    %v1097 = vpack.c.b16 %v1036, %v1035
    %v1098 = vpack.c.b16 %v1038, %v1037
    %v1099 = vpack.c.b16 %v1040, %v1039
    %v1100 = vpack.c.b16 %v1042, %v1041
    %v1101 = vpack.c.b16 %v1044, %v1043
    %v1102 = vpack.c.b16 %v1046, %v1045
    %v1103 = vpack.c.b16 %v1048, %v1047
    %v1104 = vpack.c.b16 %v1050, %v1049
    %v1105 = vpack.c.b16 %v1052, %v1051
    %v1106 = vpack.c.b16 %v1054, %v1053
    %v1107 = vpack.c.b16 %v1056, %v1055
    %v1108 = vpack.c.b16 %v1058, %v1057
    %v1109 = vpack.c.b16 %v1060, %v1059
    %v1110 = vpack.c.b16 %v1062, %v1061
    %v1111 = vpack.c.b16 %v1064, %v1063
    %v1112 = vpack.c.b16 %v1066, %v1065
    %v1113 = vpack.c.b16 %v1068, %v1067
    %v1114 = vpack.c.b16 %v1070, %v1069
    %v1115 = vpack.c.b16 %v1072, %v1071
    %v1116 = vpack.c.b16 %v1074, %v1073
    %v1117 = vpack.c.b16 %v1076, %v1075
    %v1118 = vpack.c.b16 %v1078, %v1077
    %v1119 = vpack.c.b16 %v1080, %v1079
    %v1120 = vpack.c.b16 %v1082, %v1081
    %v1121 = vpack.c.b16 %v1084, %v1083
    %v1122 = vpack.c.b16 %v1086, %v1085
    %v1123 = vpack.c.b16 %v1088, %v1087
    %v1124 = vpack.c.b16 %v1090, %v1089
    %v1125 = vpack.c.b16 %v1092, %v1091
    %v1126 = vpack.c.b16 %v1094, %v1093
    %1159 = vmatpush.bf16.msra.mxu0 %v1102
    %1160 = vmatpush.bf16.msra.mxu0 %v1101
    %1161 = vmatpush.bf16.msra.mxu0 %v1100
    %1162 = vmatpush.bf16.msra.mxu0 %v1099
    %1163 = vmatpush.bf16.msra.mxu0 %v1098
    %1164 = vmatpush.bf16.msra.mxu0 %v1097
    %1165 = vmatpush.bf16.msra.mxu0 %v1096
    %1166 = vmatpush.bf16.msra.mxu0 %v1095
    %1167 = vmatmul.bf16.gmra.mxu0 %v895
    %v1168 = vpop.f32.mrf.mxu0
    %v1169 = vadd.f32 %v965, %v1168
    %v1170 = vpop.f32.mrf.mxu0
    %v1171 = vadd.f32 %v965, %v1170
    %1172 = vdwg.mxu0
    %1173 = vmatpush.bf16.msra.mxu0 %v1110
    %1174 = vmatpush.bf16.msra.mxu0 %v1109
    %1175 = vmatpush.bf16.msra.mxu0 %v1108
    %1176 = vmatpush.bf16.msra.mxu0 %v1107
    %1177 = vmatpush.bf16.msra.mxu0 %v1106
    %1178 = vmatpush.bf16.msra.mxu0 %v1105
    %1179 = vmatpush.bf16.msra.mxu0 %v1104
    %1180 = vmatpush.bf16.msra.mxu0 %v1103
    %1181 = vmatmul.bf16.gmra.mxu0 %v896
    %v1182 = vpop.f32.mrf.mxu0
    %v1183 = vadd.f32 %v1169, %v1182
    %v1184 = vpop.f32.mrf.mxu0
    %v1185 = vadd.f32 %v1171, %v1184
    %1186 = vdwg.mxu0
    %1187 = vmatpush.bf16.msra.mxu0 %v1118
    %1188 = vmatpush.bf16.msra.mxu0 %v1117
    %1189 = vmatpush.bf16.msra.mxu0 %v1116
    %1190 = vmatpush.bf16.msra.mxu0 %v1115
    %1191 = vmatpush.bf16.msra.mxu0 %v1114
    %1192 = vmatpush.bf16.msra.mxu0 %v1113
    %1193 = vmatpush.bf16.msra.mxu0 %v1112
    %1194 = vmatpush.bf16.msra.mxu0 %v1111
    %1195 = vmatmul.bf16.gmra.mxu0 %v897
    %v1196 = vpop.f32.mrf.mxu0
    %v1197 = vadd.f32 %v1183, %v1196
    %v1198 = vpop.f32.mrf.mxu0
    %v1199 = vadd.f32 %v1185, %v1198
    %1200 = vdwg.mxu0
    %1201 = vmatpush.bf16.msra.mxu0 %v1126
    %1202 = vmatpush.bf16.msra.mxu0 %v1125
    %1203 = vmatpush.bf16.msra.mxu0 %v1124
    %1204 = vmatpush.bf16.msra.mxu0 %v1123
    %1205 = vmatpush.bf16.msra.mxu0 %v1122
    %1206 = vmatpush.bf16.msra.mxu0 %v1121
    %1207 = vmatpush.bf16.msra.mxu0 %v1120
    %1208 = vmatpush.bf16.msra.mxu0 %v1119
    %1209 = vmatmul.bf16.gmra.mxu0 %v898
    %v1210 = vpop.f32.mrf.mxu0
    %v1211 = vadd.f32 %v1197, %v1210
    %v1212 = vpop.f32.mrf.mxu0
    %v1213 = vadd.f32 %v1199, %v1212
    %1214 = vdwg.mxu0
    %1215 = vst [vmem:[%s9] sm:$0xff] %v1211
    %1216 = vst [vmem:[%s9 + $0x8] sm:$0xff] %v1213
    // Predicated region
    $region50: #{critic_forward.1} parent=1 // pred_check
      _
    $region51: #{critic_forward.1} parent=1 // pred_check_branch
      %1218 = sbr.rel (0) target = $region53
    $region52: #{critic_forward.1} parent=1 // pred_region
      _
    $region53: #{critic_forward.1} parent=1 // pred_fallthru
      _
    // Predicated region
    $region54: #{critic_forward.1} parent=1 // pred_check
      _
    $region55: #{critic_forward.1} parent=1 // pred_check_branch
      %1220 = sbr.rel (0) target = $region57
    $region56: #{critic_forward.1} parent=1 // pred_region
      _
    $region57: #{critic_forward.1} parent=1 // pred_fallthru
      _
    %1221 = vsyncpa [#allocation3], 1
    %1222 = vsyncpa [#allocation5], 1

</llo_original>
